<compile_context>
chip_gen: v7x
topology: tpu7x:2x2x1
jax: 0.10.0
libtpu: 0.0.40
codegen_flags: <defaults>
</compile_context>

<pallas_src>
import jax
import jax.numpy as jnp
from jax.experimental import pallas as pl
from jax.experimental.pallas import tpu as pltpu


def _subject_heads_kernel(x_ref, m_ref, w_ref, b_ref, out_ref):
    # x_ref : (TR, H)  encoder rows (native dtype, e.g. bf16) -- streamed
    # m_ref : (TR, 1)  f32 attention mask (0 => padding)
    # w_ref : (H, 2)   stacked [start, end] head weights -- resident
    # b_ref : (1, 2)   f32 biases -- resident
    # out_ref: (TR, 2) f32 masked sigmoid probabilities
    logits = jnp.dot(x_ref[...], w_ref[...],
                     preferred_element_type=jnp.float32)      # MXU, (TR, 2)
    probs = jax.nn.sigmoid(logits + b_ref[...])               # EUP
    out_ref[...] = jnp.where(m_ref[...] != 0.0, probs, 0.0)   # masked_fill


def casrel_subject_heads(bert_embed, attention_mask, w_stacked, bias,
                         *, row_tile=2048):
    """Subject start/end classification heads of CASREL.

    bert_embed:     (B, S, H) encoder output (bf16 or f32)
    attention_mask: (B, S)    int/float; 0 marks padding
    w_stacked:      (2, H)    [W_start; W_end] in PyTorch Linear layout
    bias:           (2,)      [b_start, b_end]
    Returns (start, end), each (B, S, 1) float32.
    """
    B, S, H = bert_embed.shape
    R = B * S

    x = bert_embed.reshape(R, H)                          # native dtype, no pad
    m = attention_mask.reshape(R, 1).astype(jnp.float32)  # tiny vs x
    w_t = jnp.transpose(w_stacked).astype(x.dtype)        # (H, 2) stationary
    b = bias.reshape(1, 2).astype(jnp.float32)

    # Row tile: biggest tile <= row_tile, but prefer >= 8 grid steps (v7x has
    # two TensorCores on the "parallel" axis; also keeps the pipeline deep).
    if R <= row_tile:
        tr = R
    else:
        tr = max(8, (row_tile // 8) * 8)
        while pl.cdiv(R, tr) < 8 and tr > 512 and tr % 16 == 0:
            tr //= 2
    steps = pl.cdiv(R, tr)

    itm = jnp.dtype(x.dtype).itemsize
    # Scoped-VMEM budget: 3-deep buffered activation stream + double-buffered
    # small operands/outputs, 2x headroom (floor 32 MiB, cap 64 MiB).
    est_vmem = (3 * tr * H * itm
                + 2 * (tr * 4 + tr * 2 * 4 + 2 * H * itm + 2 * 4))
    vmem_limit = int(min(max(2 * est_vmem, 32 * 1024 * 1024),
                         64 * 1024 * 1024))

    cost = pl.CostEstimate(
        flops=2 * R * H * 2,
        transcendentals=2 * R,
        bytes_accessed=R * H * itm + R * 4 + 2 * H * itm + 8 + R * 2 * 4,
    )

    # 3-deep pipelining on the streamed activations only when the grid is long
    # enough to benefit; otherwise keep the default double-buffering.
    if steps >= 3:
        embed_spec = pl.BlockSpec((tr, H), lambda i: (i, 0),
                                  pipeline_mode=pl.Buffered(3))
    else:
        embed_spec = pl.BlockSpec((tr, H), lambda i: (i, 0))

    out = pl.pallas_call(
        _subject_heads_kernel,
        out_shape=jax.ShapeDtypeStruct((R, 2), jnp.float32),
        grid=(steps,),
        in_specs=[
            embed_spec,                                    # streamed activations
            pl.BlockSpec((tr, 1), lambda i: (i, 0)),       # mask column
            pl.BlockSpec((H, 2), lambda i: (0, 0)),        # resident weights
            pl.BlockSpec((1, 2), lambda i: (0, 0)),        # resident biases
        ],
        out_specs=pl.BlockSpec((tr, 2), lambda i: (i, 0)),
        compiler_params=pltpu.CompilerParams(
            dimension_semantics=("parallel",),
            vmem_limit_bytes=vmem_limit),
        cost_estimate=cost,
    )(x, m, w_t, b)

    start = out[:, 0:1].reshape(B, S, 1)
    end = out[:, 1:2].reshape(B, S, 1)
    return start, end


def fake_bert_encoder(params, input_ids, token_type_ids,
                      out_dtype=jnp.bfloat16):
    # Deterministic stand-in for BertModel: word + type + position embeddings,
    # tanh nonlinearity (plain-JAX glue, not the kernel hot path).
    word_emb, type_emb, pos_emb = params
    S = input_ids.shape[1]
    emb = word_emb[input_ids] + type_emb[token_type_ids] + pos_emb[None, :S, :]
    return jnp.tanh(emb).astype(out_dtype)


def init_params(key, vocab_size, seq_l, hidden):
    k1, k2, k3, k4, k5 = jax.random.split(key, 5)
    word_emb = jax.random.normal(k1, (vocab_size, hidden), jnp.float32) * 0.02
    type_emb = jax.random.normal(k2, (2, hidden), jnp.float32) * 0.02
    pos_emb = jax.random.normal(k3, (seq_l, hidden), jnp.float32) * 0.02
    # Xavier-uniform init for Linear(hidden, 1): bound = sqrt(6/(hidden+1))
    bound = (6.0 / (hidden + 1)) ** 0.5
    w_start = jax.random.uniform(k4, (hidden,), jnp.float32, -bound, bound)
    w_end = jax.random.uniform(k5, (hidden,), jnp.float32, -bound, bound)
    w_stacked = jnp.stack([w_start, w_end], axis=0)       # (2, hidden)
    bias = jnp.zeros((2,), jnp.float32)                   # biases filled with 0
    return (word_emb, type_emb, pos_emb), w_stacked, bias


def reference_heads(bert_embed, attention_mask, w_stacked, bias):
    # Pure-JAX reference on the same (possibly bf16-rounded) inputs with f32
    # accumulation, mirroring the kernel's numerics.
    x32 = bert_embed.astype(jnp.float32)
    w32 = w_stacked.astype(bert_embed.dtype).astype(jnp.float32)
    logits = jnp.einsum("bsh,oh->bso", x32, w32,
                        precision=jax.lax.Precision.HIGHEST)
    logits = logits + bias[None, None, :]
    probs = jax.nn.sigmoid(logits)
    probs = jnp.where(attention_mask[..., None] != 0, probs, 0.0)
    return probs[..., 0:1], probs[..., 1:2]


if __name__ == "__main__":
    key = jax.random.PRNGKey(0)

    # ---- test 1: small shapes, single grid step (block == full array) ----
    B, S, H, V = 2, 8, 32, 64
    k_ids, k_params, key = jax.random.split(key, 3)
    input_ids = jax.random.randint(k_ids, (B, S), 0, V, dtype=jnp.int32)
    token_type_ids = jnp.zeros((B, S), jnp.int32)
    attention_mask = jnp.array(
        [[1] * S, [1] * (S // 2) + [0] * (S - S // 2)], dtype=jnp.int32)

    enc_params, w_stacked, bias = init_params(k_params, V, S, H)
    embed = fake_bert_encoder(enc_params, input_ids, token_type_ids)

    start, end = casrel_subject_heads(embed, attention_mask, w_stacked, bias)
    start = jax.block_until_ready(start)
    end = jax.block_until_ready(end)

    ref_s, ref_e = reference_heads(embed, attention_mask, w_stacked, bias)
    assert start.shape == (B, S, 1) and end.shape == (B, S, 1)
    assert jnp.allclose(start, ref_s, atol=1e-5)
    assert jnp.allclose(end, ref_e, atol=1e-5)

    # ---- test 2: multi-step grid, partial tail block, Buffered(3) path ----
    B2, S2, H2, V2 = 3, 40, 128, 128           # R = 120, tr = 32 -> 4 steps
    k_ids2, k_params2, _ = jax.random.split(key, 3)
    input_ids2 = jax.random.randint(k_ids2, (B2, S2), 0, V2, dtype=jnp.int32)
    token_type_ids2 = jnp.zeros((B2, S2), jnp.int32)
    lengths = jnp.array([S2, S2 - 7, S2 // 2])
    attention_mask2 = (jnp.arange(S2)[None, :] < lengths[:, None]).astype(
        jnp.int32)

    enc_params2, w_stacked2, _ = init_params(k_params2, V2, S2, H2)
    bias2 = jnp.array([0.3, -0.2], jnp.float32)   # nonzero to exercise bias add
    embed2 = fake_bert_encoder(enc_params2, input_ids2, token_type_ids2)

    start2, end2 = casrel_subject_heads(embed2, attention_mask2, w_stacked2,
                                        bias2, row_tile=32)
    start2 = jax.block_until_ready(start2)
    end2 = jax.block_until_ready(end2)

    ref_s2, ref_e2 = reference_heads(embed2, attention_mask2, w_stacked2, bias2)
    assert start2.shape == (B2, S2, 1) and end2.shape == (B2, S2, 1)
    assert jnp.allclose(start2, ref_s2, atol=1e-5)
    assert jnp.allclose(end2, ref_e2, atol=1e-5)

    print("KERNEL_OK")
</pallas_src>

<mosaic_0001>
module attributes {stable_mosaic.version = 11 : i64} {
  func.func @_subject_heads_kernel(%arg0: i32, %arg1: memref<16x32xbf16, #tpu.memory_space<vmem>>, %arg2: memref<16x1xf32, #tpu.memory_space<vmem>>, %arg3: memref<32x2xbf16, #tpu.memory_space<vmem>>, %arg4: memref<1x2xf32, #tpu.memory_space<vmem>>, %arg5: memref<16x2xf32, #tpu.memory_space<vmem>>) attributes {dimension_semantics = [#tpu.dimension_semantics<parallel>], iteration_bounds = array<i64: 1>, scalar_prefetch = 0 : i64, scratch_operands = 0 : i64, tpu.core_type = #tpu.core_type<tc>, window_params = [{transform_indices = @transform_0, window_bounds = array<i64: 16, 32>}, {transform_indices = @transform_1, window_bounds = array<i64: 16, 1>}, {pipeline_mode = #tpu.pipeline_mode<synchronous>, transform_indices = @transform_2, window_bounds = array<i64: 32, 2>}, {pipeline_mode = #tpu.pipeline_mode<synchronous>, transform_indices = @transform_3, window_bounds = array<i64: 1, 2>}, {transform_indices = @transform_4, window_bounds = array<i64: 16, 2>}]} {
    %c0 = arith.constant 0 : index
    %c0_0 = arith.constant 0 : index
    %0 = vector.load %arg1[%c0, %c0_0] : memref<16x32xbf16, #tpu.memory_space<vmem>>, vector<16x32xbf16>
    %c0_1 = arith.constant 0 : index
    %c0_2 = arith.constant 0 : index
    %1 = vector.load %arg3[%c0_1, %c0_2] : memref<32x2xbf16, #tpu.memory_space<vmem>>, vector<32x2xbf16>
    %cst = arith.constant dense<0.000000e+00> : vector<16x2xf32>
    %2 = tpu.matmul %0, %1, %cst {dimension_numbers = #tpu.dot_dimension_numbers<[1], [0], [0], [1], [0, 0, 1, 1], [], []>} : vector<16x32xbf16>, vector<32x2xbf16>, vector<16x2xf32> -> vector<16x2xf32>
    %c0_3 = arith.constant 0 : index
    %c0_4 = arith.constant 0 : index
    %3 = vector.load %arg4[%c0_3, %c0_4] : memref<1x2xf32, #tpu.memory_space<vmem>>, vector<1x2xf32>
    %4 = vector.broadcast %3 : vector<1x2xf32> to vector<16x2xf32>
    %5 = arith.addf %2, %4 : vector<16x2xf32>
    %6 = arith.negf %5 : vector<16x2xf32>
    %7 = math.exp %6 : vector<16x2xf32>
    %cst_5 = arith.constant 1.000000e+00 : f32
    %8 = vector.broadcast %cst_5 : f32 to vector<16x2xf32>
    %9 = arith.addf %8, %7 : vector<16x2xf32>
    %10 = arith.divf %8, %9 : vector<16x2xf32>
    %c0_6 = arith.constant 0 : index
    %c0_7 = arith.constant 0 : index
    %11 = vector.load %arg2[%c0_6, %c0_7] : memref<16x1xf32, #tpu.memory_space<vmem>>, vector<16x1xf32>
    %cst_8 = arith.constant 0.000000e+00 : f32
    %12 = vector.broadcast %cst_8 : f32 to vector<16x1xf32>
    %13 = arith.cmpf one, %11, %12 : vector<16x1xf32>
    %cst_9 = arith.constant 0.000000e+00 : f32
    %14 = vector.shape_cast %13 : vector<16x1xi1> to vector<16x1xi1>
    %15 = vector.broadcast %14 : vector<16x1xi1> to vector<16x2xi1>
    %16 = vector.broadcast %cst_9 : f32 to vector<16x2xf32>
    %17 = arith.select %15, %10, %16 : vector<16x2xi1>, vector<16x2xf32>
    %c0_10 = arith.constant 0 : index
    %c0_11 = arith.constant 0 : index
    %18 = vector.load %arg5[%c0_10, %c0_11] : memref<16x2xf32, #tpu.memory_space<vmem>>, vector<16x2xf32>
    tpu.vector_store %arg5[%c0_10, %c0_11], %17 {strides = array<i32>} : memref<16x2xf32, #tpu.memory_space<vmem>>, vector<16x2xf32>,
    return
  }
  func.func @transform_0(%arg0: i32) -> (i32, i32) {
    %c0_i32 = arith.constant 0 : i32
    %c0_i32_0 = arith.constant 0 : i32
    return %arg0, %c0_i32 : i32, i32
  }
  func.func @transform_1(%arg0: i32) -> (i32, i32) {
    %c0_i32 = arith.constant 0 : i32
    %c0_i32_0 = arith.constant 0 : i32
    return %arg0, %c0_i32 : i32, i32
  }
  func.func @transform_2(%arg0: i32) -> (i32, i32) {
    %c0_i32 = arith.constant 0 : i32
    %c0_i32_0 = arith.constant 0 : i32
    %c0_i32_1 = arith.constant 0 : i32
    return %c0_i32, %c0_i32_0 : i32, i32
  }
  func.func @transform_3(%arg0: i32) -> (i32, i32) {
    %c0_i32 = arith.constant 0 : i32
    %c0_i32_0 = arith.constant 0 : i32
    %c0_i32_1 = arith.constant 0 : i32
    return %c0_i32, %c0_i32_0 : i32, i32
  }
  func.func @transform_4(%arg0: i32) -> (i32, i32) {
    %c0_i32 = arith.constant 0 : i32
    %c0_i32_0 = arith.constant 0 : i32
    return %arg0, %c0_i32 : i32, i32
  }
}

</mosaic_0001>

<llo_original>
// kernel: tpu_custom_call.1
$region0: #{tpu_custom_call.1}
  #allocation0 [shape = 'u32[]', space=smem, size = 0x4, offset = 0x4, fixed_abs, tag = 'smem constant byte address 0x4 - core index']
  #allocation1 [shape = 'u32[144,128]{1,0:T(1,128)}', space=vmem, size = 0x12000, scoped, tag = 'internal scratch']
  %s0 = inlined_call_operand.vmem [shape: bf16[16,32], index: 0, kind: input, shape index: {}]
  %s1 = inlined_call_operand.vmem [shape: f32[16,1], index: 1, kind: input, shape index: {}]
  %s2 = inlined_call_operand.vmem [shape: bf16[32,2], index: 2, kind: input, shape index: {}]
  %s3 = inlined_call_operand.vmem [shape: f32[1,2], index: 3, kind: input, shape index: {}]
  %s4 = inlined_call_operand.vmem [shape: f32[16,2], index: 4, kind: output, shape index: {}]
  %s5 = sld [smem:[#allocation0]]
  $region26: #{tpu_custom_call.1} parent=0
    _
  %s7 = ssub.s32 1, %s5
  %s8 = scalar_select 0, %s7, %s5
  // Predicated region
  $region2: #{tpu_custom_call.1} parent=0 // pred_check
    _
  $region3: #{tpu_custom_call.1} parent=0 // pred_check_branch
    %10 = sbr.rel (0) target = $region5
  $region4: #{tpu_custom_call.1} parent=0 // pred_region
    _
  $region5: #{tpu_custom_call.1} parent=0 // pred_fallthru
    _
  // Predicated region
  $region6: #{tpu_custom_call.1} parent=0 // pred_check
    _
  $region7: #{tpu_custom_call.1} parent=0 // pred_check_branch
    %12 = sbr.rel (0) target = $region9
  $region8: #{tpu_custom_call.1} parent=0 // pred_region
    _
  $region9: #{tpu_custom_call.1} parent=0 // pred_fallthru
    _
  // Predicated region
  $region10: #{tpu_custom_call.1} parent=0 // pred_check
    _
  $region11: #{tpu_custom_call.1} parent=0 // pred_check_branch
    %14 = sbr.rel (0) target = $region13
  $region12: #{tpu_custom_call.1} parent=0 // pred_region
    _
  $region13: #{tpu_custom_call.1} parent=0 // pred_fallthru
    _
  // Predicated region
  $region14: #{tpu_custom_call.1} parent=0 // pred_check
    _
  $region15: #{tpu_custom_call.1} parent=0 // pred_check_branch
    %16 = sbr.rel (0) target = $region17
  $region16: #{tpu_custom_call.1} parent=0 // pred_region
    _
  $region17: #{tpu_custom_call.1} parent=0 // pred_fallthru
    _
  %v18 = vld [vmem:[%s0] sm:$0xf]
  %v19 = vld [vmem:[%s0 + $0x4] sm:$0xf]
  %v20 = vld [vmem:[%s2] sm:$0xf]
  %v21 = vld [vmem:[%s2 + $0x4] sm:$0xf]
  %v22 = vld [vmem:[%s2 + $0x8] sm:$0xf]
  %v23 = vld [vmem:[%s2 + $0xc] sm:$0xf]
  %v24 = vld [vmem:[%s3] sm:$0x1]
  %v26 = vlaneseq
  %v27 = vshrl.u32 %v26, 7
  %v28 = vsub.s32 0, %v27
  %v29 = vrot.slane %v24, %v28
  %v33 = vunpack.c.l.b16 %v18
  %v34 = vunpack.c.l.b16 %v19
  %v35 = vpack.c.b16 %v34, %v33
  %v40 = vunpack.c.l.b16 %v20
  %v41 = vunpack.c.l.b16 %v21
  %v42 = vunpack.c.l.b16 %v22
  %v43 = vunpack.c.l.b16 %v23
  %v44 = vpack.c.b16 %v41, %v40
  %v45 = vpack.c.b16 %v43, %v42
  %vm48 = vcmask 261120
  %v50 = vsel %vm48, %v35, 0
  %52 = vmatprep.subr.bf16.mxu0 0
  %53 = vmatpush1.bf16.msra.mxu0 %v44
  %54 = vmatprep.subr.bf16.mxu0 0
  %55 = vmatpush1.bf16.msra.mxu0 %v45
  %56 = vmatprep.subr.bf16.mxu0 0
  %57 = vmatpush1.bf16.msra.mxu0 0
  %58 = vmatprep.subr.bf16.mxu0 0
  %59 = vmatpush1.bf16.msra.mxu0 0
  %60 = vmatprep.subr.bf16.mxu0 0
  %61 = vmatpush1.bf16.msra.mxu0 0
  %62 = vmatprep.subr.bf16.mxu0 0
  %63 = vmatpush1.bf16.msra.mxu0 0
  %64 = vmatprep.subr.bf16.mxu0 0
  %65 = vmatpush1.bf16.msra.mxu0 0
  %66 = vmatprep.subr.bf16.mxu0 0
  %67 = vmatpush1.bf16.msra.mxu0 0
  %68 = vmatprep.subr.bf16.mxu0 0
  %69 = vmatpush1.bf16.msra.mxu0 0
  %70 = vmatprep.subr.bf16.mxu0 0
  %71 = vmatpush1.bf16.msra.mxu0 0
  %72 = vmatprep.subr.bf16.mxu0 0
  %73 = vmatpush1.bf16.msra.mxu0 0
  %74 = vmatprep.subr.bf16.mxu0 0
  %75 = vmatpush1.bf16.msra.mxu0 0
  %76 = vmatprep.subr.bf16.mxu0 0
  %77 = vmatpush1.bf16.msra.mxu0 0
  %78 = vmatprep.subr.bf16.mxu0 0
  %79 = vmatpush1.bf16.msra.mxu0 0
  %80 = vmatprep.subr.bf16.mxu0 0
  %81 = vmatpush1.bf16.msra.mxu0 0
  %82 = vmatprep.subr.bf16.mxu0 0
  %83 = vmatpush1.bf16.msra.mxu0 0
  %84 = vmatprep.mubr.bf16.mxu0 0
  %85 = vmatmul.mubr.bf16.gmra.mrb[0].mxu0 %v50
  %v86 = vpop.f32.mrb[0].mxu0
  %v87 = vadd.f32 %v29, %v86
  %v88 = vpop.f32.mrb[0].mxu0
  %v89 = vpop.f32.mrb[0].mxu0
  %v90 = vadd.f32 %v29, %v89
  %v91 = vpop.f32.mrb[0].mxu0
  %92 = vdwg.mxu0
  %v93 = vxor.u32 %v87, 2147483648
  %v94 = vxor.u32 %v90, 2147483648
  %v95 = vmul.f32 %v93, 1.442695
  %v96 = vpow.pop %v95
  %v97 = vmul.f32 %v94, 1.442695
  %v98 = vpow.pop %v97
  %v99 = vadd.f32 %v96, 1.0
  %v100 = vadd.f32 %v98, 1.0
  %v101 = vrcp.pop %v99
  %v102 = vmul.f32 1.0, %v101
  %v103 = vrcp.pop %v100
  %v104 = vmul.f32 1.0, %v103
  %v105 = vld [vmem:[%s1] sm:$0xff]
  %v106 = vld [vmem:[%s1 + $0x8] sm:$0xff]
  %vm107 = vcmp.ne.f32.partialorder %v105, 0.0
  %vm108 = vcmp.ne.f32.partialorder %v106, 0.0
  %v109 = vsel %vm107, 1, 0
  %v110 = vsel %vm108, 1, 0
  %111 = vset.pattern.permute.xlu0 0
  %112 = vperm.xlu0 %111, %v109
  %v113 = vpop.permute.xlu0 %112
  %114 = vset.pattern.permute.xlu0 0
  %115 = vperm.xlu0 %114, %v110
  %v116 = vpop.permute.xlu0 %115
  %vm117 = vcmp.eq.s32.totalorder %v113, 1
  %vm118 = vcmp.eq.s32.totalorder %v116, 1
  %v119 = vsel %vm117, %v102, 0.0
  %v120 = vsel %vm118, %v104, 0.0
  %vm121 = vcmask 15360
  %122 = vst.msk [vmem:[%s4] sm:$0xff] %vm121, %v119
  %123 = vst.msk [vmem:[%s4 + $0x8] sm:$0xff] %vm121, %v120
  // Predicated region
  $region18: #{tpu_custom_call.1} parent=0 // pred_check
    _
  $region19: #{tpu_custom_call.1} parent=0 // pred_check_branch
    %125 = sbr.rel (0) target = $region21
  $region20: #{tpu_custom_call.1} parent=0 // pred_region
    _
  $region21: #{tpu_custom_call.1} parent=0 // pred_fallthru
    _
  // Predicated region
  $region22: #{tpu_custom_call.1} parent=0 // pred_check
    _
  $region23: #{tpu_custom_call.1} parent=0 // pred_check_branch
    %127 = sbr.rel (0) target = $region25
  $region24: #{tpu_custom_call.1} parent=0 // pred_region
    _
  $region25: #{tpu_custom_call.1} parent=0 // pred_fallthru
    _

</llo_original>
